<compile_context>
chip_gen: v6e
topology: v6e:2x2x1
jax: 0.10.0
libtpu: 0.0.40
codegen_flags: <defaults>
</compile_context>

<pallas_src>
import jax
import jax.numpy as jnp
from jax.experimental import pallas as pl
from jax.experimental.pallas import tpu as pltpu

IN_DIM = 2
HID_DIM = 150
OUT_DIM = 2


def _round_up(n, m):
    return ((n + m - 1) // m) * m


def mynet_kernel(xT_ref, w1_ref, b1_ref, w2_ref, b2_ref, oT_ref):
    # xT_ref: (IN_DIM, TB)   batch on lanes
    # w1_ref: (HID_DIM, IN_DIM), b1_ref: (HID_DIM, 1)
    # w2_ref: (OUT_DIM, HID_DIM), b2_ref: (OUT_DIM, 1)
    # oT_ref: (OUT_DIM, TB)  batch on lanes (lane-dense stores)

    # --- fc1 + ReLU: K=2 contraction done as two VPU broadcast FMAs (no MXU) ---
    x0 = xT_ref[0:1, :]            # (1, TB)
    x1 = xT_ref[1:2, :]            # (1, TB)
    h = (w1_ref[:, 0:1] * x0       # (HID, 1) * (1, TB) -> (HID, TB)
         + w1_ref[:, 1:2] * x1
         + b1_ref[...])
    h = jnp.maximum(h, 0.0)

    # --- fc2 + ReLU: MXU matmul with full-width N = TB (batch on lanes) ---
    y = jnp.dot(w2_ref[...], h, preferred_element_type=jnp.float32)
    y = y + b2_ref[...]
    oT_ref[...] = jnp.maximum(y, 0.0).astype(oT_ref.dtype)


def mynet_forward(x, w1, b1, w2, b2, tb=512):
    """x: (B, 2) f32; w1: (150, 2); b1: (150,); w2: (2, 150); b2: (2,).

    Returns (B, 2) f32, identical semantics to the PyTorch module's forward.
    """
    B = x.shape[0]
    # Batch tile: multiple of 128 (lane width); don't over-pad tiny batches.
    TB = min(tb, _round_up(B, 128))
    B_pad = _round_up(B, TB)
    grid = (pl.cdiv(B_pad, TB),)

    # Transpose to (features, batch) and zero-pad the batch (lane) axis.
    xT = jnp.pad(x.T.astype(jnp.float32), ((0, 0), (0, B_pad - B)))
    b1c = b1.reshape(HID_DIM, 1).astype(jnp.float32)
    b2c = b2.reshape(OUT_DIM, 1).astype(jnp.float32)

    oT = pl.pallas_call(
        mynet_kernel,
        out_shape=jax.ShapeDtypeStruct((OUT_DIM, B_pad), jnp.float32),
        grid=grid,
        in_specs=[
            pl.BlockSpec((IN_DIM, TB), lambda i: (0, i)),        # x tile (batch-tiled)
            pl.BlockSpec((HID_DIM, IN_DIM), lambda i: (0, 0)),   # w1 (resident)
            pl.BlockSpec((HID_DIM, 1), lambda i: (0, 0)),        # b1
            pl.BlockSpec((OUT_DIM, HID_DIM), lambda i: (0, 0)),  # w2
            pl.BlockSpec((OUT_DIM, 1), lambda i: (0, 0)),        # b2
        ],
        out_specs=pl.BlockSpec((OUT_DIM, TB), lambda i: (0, i)),
        compiler_params=pltpu.CompilerParams(
            dimension_semantics=("parallel",),   # batch tiles are independent
        ),
    )(xT, w1.astype(jnp.float32), b1c, w2.astype(jnp.float32), b2c)

    return oT[:, :B].T


def init_params(key):
    """Mimics PyTorch Linear default init: U(-1/sqrt(fan_in), 1/sqrt(fan_in)).

    Weights kept in torch layout: (out_features, in_features)."""
    k1, k2, k3, k4 = jax.random.split(key, 4)
    bound1 = 1.0 / jnp.sqrt(jnp.float32(IN_DIM))
    bound2 = 1.0 / jnp.sqrt(jnp.float32(HID_DIM))
    w1 = jax.random.uniform(k1, (HID_DIM, IN_DIM), jnp.float32, -bound1, bound1)
    b1 = jax.random.uniform(k2, (HID_DIM,), jnp.float32, -bound1, bound1)
    w2 = jax.random.uniform(k3, (OUT_DIM, HID_DIM), jnp.float32, -bound2, bound2)
    b2 = jax.random.uniform(k4, (OUT_DIM,), jnp.float32, -bound2, bound2)
    return w1, b1, w2, b2


def _reference(x, w1, b1, w2, b2):
    h = jnp.maximum(x @ w1.T + b1, 0.0)
    return jnp.maximum(h @ w2.T + b2, 0.0)


if __name__ == "__main__":
    key = jax.random.PRNGKey(0)
    pkey, xkey, xkey2 = jax.random.split(key, 3)
    w1, b1, w2, b2 = init_params(pkey)

    # Small batch of 2-dim observations (forward expects feature dim = 2).
    B = 2
    x = jax.random.uniform(xkey, (B, IN_DIM), jnp.float32, 0.0, 5.0)

    out = mynet_forward(x, w1, b1, w2, b2)
    out = jax.block_until_ready(out)
    ref = _reference(x, w1, b1, w2, b2)
    assert out.shape == (B, OUT_DIM)
    assert jnp.allclose(out, ref, atol=1e-5, rtol=1e-5)

    # Larger, non-multiple batch to exercise tiling + padding/slicing path.
    B2 = 1000
    x2 = jax.random.uniform(xkey2, (B2, IN_DIM), jnp.float32, -3.0, 3.0)
    out2 = jax.block_until_ready(mynet_forward(x2, w1, b1, w2, b2))
    ref2 = _reference(x2, w1, b1, w2, b2)
    assert out2.shape == (B2, OUT_DIM)
    assert jnp.allclose(out2, ref2, atol=1e-4, rtol=1e-5)

    print("KERNEL_OK")
</pallas_src>

<mosaic_0001>
module attributes {stable_mosaic.version = 11 : i64} {
  func.func @mynet_kernel(%arg0: i32, %arg1: memref<2x128xf32, #tpu.memory_space<vmem>>, %arg2: memref<150x2xf32, #tpu.memory_space<vmem>>, %arg3: memref<150x1xf32, #tpu.memory_space<vmem>>, %arg4: memref<2x150xf32, #tpu.memory_space<vmem>>, %arg5: memref<2x1xf32, #tpu.memory_space<vmem>>, %arg6: memref<2x128xf32, #tpu.memory_space<vmem>>) attributes {dimension_semantics = [#tpu.dimension_semantics<parallel>], iteration_bounds = array<i64: 1>, scalar_prefetch = 0 : i64, scratch_operands = 0 : i64, tpu.core_type = #tpu.core_type<tc>, window_params = [{transform_indices = @transform_0, window_bounds = array<i64: 2, 128>}, {pipeline_mode = #tpu.pipeline_mode<synchronous>, transform_indices = @transform_1, window_bounds = array<i64: 150, 2>}, {pipeline_mode = #tpu.pipeline_mode<synchronous>, transform_indices = @transform_2, window_bounds = array<i64: 150, 1>}, {pipeline_mode = #tpu.pipeline_mode<synchronous>, transform_indices = @transform_3, window_bounds = array<i64: 2, 150>}, {pipeline_mode = #tpu.pipeline_mode<synchronous>, transform_indices = @transform_4, window_bounds = array<i64: 2, 1>}, {transform_indices = @transform_5, window_bounds = array<i64: 2, 128>}]} {
    %c0 = arith.constant 0 : index
    %c0_0 = arith.constant 0 : index
    %0 = vector.load %arg1[%c0, %c0_0] : memref<2x128xf32, #tpu.memory_space<vmem>>, vector<1x128xf32>
    %c1 = arith.constant 1 : index
    %c0_1 = arith.constant 0 : index
    %1 = vector.load %arg1[%c1, %c0_1] : memref<2x128xf32, #tpu.memory_space<vmem>>, vector<1x128xf32>
    %c0_2 = arith.constant 0 : index
    %c0_3 = arith.constant 0 : index
    %2 = vector.load %arg2[%c0_2, %c0_3] : memref<150x2xf32, #tpu.memory_space<vmem>>, vector<150x1xf32>
    %3 = vector.broadcast %2 : vector<150x1xf32> to vector<150x128xf32>
    %4 = vector.broadcast %0 : vector<1x128xf32> to vector<150x128xf32>
    %5 = arith.mulf %3, %4 : vector<150x128xf32>
    %c0_4 = arith.constant 0 : index
    %c1_5 = arith.constant 1 : index
    %6 = vector.load %arg2[%c0_4, %c1_5] : memref<150x2xf32, #tpu.memory_space<vmem>>, vector<150x1xf32>
    %7 = vector.broadcast %6 : vector<150x1xf32> to vector<150x128xf32>
    %8 = vector.broadcast %1 : vector<1x128xf32> to vector<150x128xf32>
    %9 = arith.mulf %7, %8 : vector<150x128xf32>
    %10 = arith.addf %5, %9 : vector<150x128xf32>
    %c0_6 = arith.constant 0 : index
    %c0_7 = arith.constant 0 : index
    %11 = vector.load %arg3[%c0_6, %c0_7] : memref<150x1xf32, #tpu.memory_space<vmem>>, vector<150x1xf32>
    %12 = vector.broadcast %11 : vector<150x1xf32> to vector<150x128xf32>
    %13 = arith.addf %10, %12 : vector<150x128xf32>
    %cst = arith.constant 0.000000e+00 : f32
    %14 = vector.broadcast %cst : f32 to vector<150x128xf32>
    %15 = arith.maximumf %13, %14 : vector<150x128xf32>
    %c0_8 = arith.constant 0 : index
    %c0_9 = arith.constant 0 : index
    %16 = vector.load %arg4[%c0_8, %c0_9] : memref<2x150xf32, #tpu.memory_space<vmem>>, vector<2x150xf32>
    %cst_10 = arith.constant dense<0.000000e+00> : vector<2x128xf32>
    %17 = tpu.matmul %16, %15, %cst_10 {dimension_numbers = #tpu.dot_dimension_numbers<[1], [0], [0], [1], [0, 0, 1, 1], [], []>} : vector<2x150xf32>, vector<150x128xf32>, vector<2x128xf32> -> vector<2x128xf32>
    %c0_11 = arith.constant 0 : index
    %c0_12 = arith.constant 0 : index
    %18 = vector.load %arg5[%c0_11, %c0_12] : memref<2x1xf32, #tpu.memory_space<vmem>>, vector<2x1xf32>
    %19 = vector.broadcast %18 : vector<2x1xf32> to vector<2x128xf32>
    %20 = arith.addf %17, %19 : vector<2x128xf32>
    %cst_13 = arith.constant 0.000000e+00 : f32
    %21 = vector.broadcast %cst_13 : f32 to vector<2x128xf32>
    %22 = arith.maximumf %20, %21 : vector<2x128xf32>
    %c0_14 = arith.constant 0 : index
    %c0_15 = arith.constant 0 : index
    %23 = vector.load %arg6[%c0_14, %c0_15] : memref<2x128xf32, #tpu.memory_space<vmem>>, vector<2x128xf32>
    tpu.vector_store %arg6[%c0_14, %c0_15], %22 {strides = array<i32>} : memref<2x128xf32, #tpu.memory_space<vmem>>, vector<2x128xf32>,
    return
  }
  func.func @transform_0(%arg0: i32) -> (i32, i32) {
    %c0_i32 = arith.constant 0 : i32
    %c0_i32_0 = arith.constant 0 : i32
    return %c0_i32, %arg0 : i32, i32
  }
  func.func @transform_1(%arg0: i32) -> (i32, i32) {
    %c0_i32 = arith.constant 0 : i32
    %c0_i32_0 = arith.constant 0 : i32
    %c0_i32_1 = arith.constant 0 : i32
    return %c0_i32, %c0_i32_0 : i32, i32
  }
  func.func @transform_2(%arg0: i32) -> (i32, i32) {
    %c0_i32 = arith.constant 0 : i32
    %c0_i32_0 = arith.constant 0 : i32
    %c0_i32_1 = arith.constant 0 : i32
    return %c0_i32, %c0_i32_0 : i32, i32
  }
  func.func @transform_3(%arg0: i32) -> (i32, i32) {
    %c0_i32 = arith.constant 0 : i32
    %c0_i32_0 = arith.constant 0 : i32
    %c0_i32_1 = arith.constant 0 : i32
    return %c0_i32, %c0_i32_0 : i32, i32
  }
  func.func @transform_4(%arg0: i32) -> (i32, i32) {
    %c0_i32 = arith.constant 0 : i32
    %c0_i32_0 = arith.constant 0 : i32
    %c0_i32_1 = arith.constant 0 : i32
    return %c0_i32, %c0_i32_0 : i32, i32
  }
  func.func @transform_5(%arg0: i32) -> (i32, i32) {
    %c0_i32 = arith.constant 0 : i32
    %c0_i32_0 = arith.constant 0 : i32
    return %c0_i32, %arg0 : i32, i32
  }
}

</mosaic_0001>

<llo_original>
// kernel: tpu_custom_call.1
$region0: #{tpu_custom_call.1}
  #allocation0 [shape = 'u32[]', space=smem, size = 0x4, offset = 0x4, fixed_abs, tag = 'smem constant byte address 0x4 - core index']
  #allocation1 [shape = 'u32[144,128]{1,0:T(1,128)}', space=vmem, size = 0x12000, scoped, tag = 'internal scratch']
  %s0 = inlined_call_operand.vmem [shape: f32[2,128], index: 0, kind: input, shape index: {}]
  %s1 = inlined_call_operand.vmem [shape: f32[150,2], index: 1, kind: input, shape index: {}]
  %s2 = inlined_call_operand.vmem [shape: f32[150,1], index: 2, kind: input, shape index: {}]
  %s3 = inlined_call_operand.vmem [shape: f32[2,150], index: 3, kind: input, shape index: {}]
  %s4 = inlined_call_operand.vmem [shape: f32[2,1], index: 4, kind: input, shape index: {}]
  %s5 = inlined_call_operand.hbm [shape: f32[2,128], index: 5, kind: output, shape index: {}]
  %s6 = sld [smem:[#allocation0]]
  $region30: #{tpu_custom_call.1} parent=0
    _
  %s8 = ssub.s32 1, %s6
  %s9 = scalar_select 0, %s8, %s6
  $region1: #{tpu_custom_call.1} parent=0
    #allocation2 [shape = 'u8[1024]{0}', space=vmem, size = 0x400, scoped, tag = 'output window, operand 0, single buffered']
    #allocation3 [shape = 's32[1]{0}', space=sflag, size = 0x4, scoped, tag = 'scoped memory for tpu_custom_call.1']
    %10 = vsyncpa [#allocation3], 0
    // Predicated region
    $region2: #{tpu_custom_call.1} parent=1 // pred_check
      _
    $region3: #{tpu_custom_call.1} parent=1 // pred_check_branch
      %12 = sbr.rel (0) target = $region5
    $region4: #{tpu_custom_call.1} parent=1 // pred_region
      _
    $region5: #{tpu_custom_call.1} parent=1 // pred_fallthru
      _
    // Predicated region
    $region6: #{tpu_custom_call.1} parent=1 // pred_check
      _
    $region7: #{tpu_custom_call.1} parent=1 // pred_check_branch
      %14 = sbr.rel (0) target = $region9
    $region8: #{tpu_custom_call.1} parent=1 // pred_region
      _
    $region9: #{tpu_custom_call.1} parent=1 // pred_fallthru
      _
    // Predicated region
    $region10: #{tpu_custom_call.1} parent=1 // pred_check
      _
    $region11: #{tpu_custom_call.1} parent=1 // pred_check_branch
      %16 = sbr.rel (0) target = $region13
    $region12: #{tpu_custom_call.1} parent=1 // pred_region
      _
    $region13: #{tpu_custom_call.1} parent=1 // pred_fallthru
      _
    // Predicated region
    $region14: #{tpu_custom_call.1} parent=1 // pred_check
      _
    $region15: #{tpu_custom_call.1} parent=1 // pred_check_branch
      %18 = sbr.rel (0) target = $region17
    $region16: #{tpu_custom_call.1} parent=1 // pred_region
      _
    $region17: #{tpu_custom_call.1} parent=1 // pred_fallthru
      _
    // Predicated region
    $region18: #{tpu_custom_call.1} parent=1 // pred_check
      _
    $region19: #{tpu_custom_call.1} parent=1 // pred_check_branch
      %20 = sbr.rel (0) target = $region21
    $region20: #{tpu_custom_call.1} parent=1 // pred_region
      _
    $region21: #{tpu_custom_call.1} parent=1 // pred_fallthru
      _
    %v21 = vld [vmem:[%s0] sm:$0x1]
    %v22 = vld [vmem:[%s0 + $0x1] sm:$0x1]
    %v23 = vld [vmem:[%s1] sm:$0xff]
    %v24 = vld [vmem:[%s1 + $0x8] sm:$0xff]
    %v25 = vld [vmem:[%s1 + $0x10] sm:$0xff]
    %v26 = vld [vmem:[%s1 + $0x18] sm:$0xff]
    %v27 = vld [vmem:[%s1 + $0x20] sm:$0xff]
    %v28 = vld [vmem:[%s1 + $0x28] sm:$0xff]
    %v29 = vld [vmem:[%s1 + $0x30] sm:$0xff]
    %v30 = vld [vmem:[%s1 + $0x38] sm:$0xff]
    %v31 = vld [vmem:[%s1 + $0x40] sm:$0xff]
    %v32 = vld [vmem:[%s1 + $0x48] sm:$0xff]
    %v33 = vld [vmem:[%s1 + $0x50] sm:$0xff]
    %v34 = vld [vmem:[%s1 + $0x58] sm:$0xff]
    %v35 = vld [vmem:[%s1 + $0x60] sm:$0xff]
    %v36 = vld [vmem:[%s1 + $0x68] sm:$0xff]
    %v37 = vld [vmem:[%s1 + $0x70] sm:$0xff]
    %v38 = vld [vmem:[%s1 + $0x78] sm:$0xff]
    %v39 = vld [vmem:[%s1 + $0x80] sm:$0xff]
    %v40 = vld [vmem:[%s1 + $0x88] sm:$0xff]
    %v41 = vld [vmem:[%s1 + $0x90] sm:$0x3f]
    %43 = vset.pattern.permute.xlu0 0
    %44 = vperm.xlu0 %43, %v23
    %v45 = vpop.permute.xlu0 %44
    %48 = vset.pattern.permute.xlu0 0
    %49 = vperm.xlu0 %48, %v24
    %v50 = vpop.permute.xlu0 %49
    %53 = vset.pattern.permute.xlu0 0
    %54 = vperm.xlu0 %53, %v25
    %v55 = vpop.permute.xlu0 %54
    %58 = vset.pattern.permute.xlu0 0
    %59 = vperm.xlu0 %58, %v26
    %v60 = vpop.permute.xlu0 %59
    %63 = vset.pattern.permute.xlu0 0
    %64 = vperm.xlu0 %63, %v27
    %v65 = vpop.permute.xlu0 %64
    %68 = vset.pattern.permute.xlu0 0
    %69 = vperm.xlu0 %68, %v28
    %v70 = vpop.permute.xlu0 %69
    %73 = vset.pattern.permute.xlu0 0
    %74 = vperm.xlu0 %73, %v29
    %v75 = vpop.permute.xlu0 %74
    %78 = vset.pattern.permute.xlu0 0
    %79 = vperm.xlu0 %78, %v30
    %v80 = vpop.permute.xlu0 %79
    %83 = vset.pattern.permute.xlu0 0
    %84 = vperm.xlu0 %83, %v31
    %v85 = vpop.permute.xlu0 %84
    %88 = vset.pattern.permute.xlu0 0
    %89 = vperm.xlu0 %88, %v32
    %v90 = vpop.permute.xlu0 %89
    %93 = vset.pattern.permute.xlu0 0
    %94 = vperm.xlu0 %93, %v33
    %v95 = vpop.permute.xlu0 %94
    %98 = vset.pattern.permute.xlu0 0
    %99 = vperm.xlu0 %98, %v34
    %v100 = vpop.permute.xlu0 %99
    %103 = vset.pattern.permute.xlu0 0
    %104 = vperm.xlu0 %103, %v35
    %v105 = vpop.permute.xlu0 %104
    %108 = vset.pattern.permute.xlu0 0
    %109 = vperm.xlu0 %108, %v36
    %v110 = vpop.permute.xlu0 %109
    %113 = vset.pattern.permute.xlu0 0
    %114 = vperm.xlu0 %113, %v37
    %v115 = vpop.permute.xlu0 %114
    %118 = vset.pattern.permute.xlu0 0
    %119 = vperm.xlu0 %118, %v38
    %v120 = vpop.permute.xlu0 %119
    %123 = vset.pattern.permute.xlu0 0
    %124 = vperm.xlu0 %123, %v39
    %v125 = vpop.permute.xlu0 %124
    %128 = vset.pattern.permute.xlu0 0
    %129 = vperm.xlu0 %128, %v40
    %v130 = vpop.permute.xlu0 %129
    %133 = vset.pattern.permute.xlu0 0
    %134 = vperm.xlu0 %133, %v41
    %v135 = vpop.permute.xlu0 %134
    %v137 = vlaneseq
    %v138 = vshrl.u32 %v137, 7
    %v139 = vsub.s32 0, %v138
    %v140 = vrot.slane %v21, %v139
    %v141 = vmul.f32 %v45, %v140
    %v142 = vmul.f32 %v50, %v140
    %v143 = vmul.f32 %v55, %v140
    %v144 = vmul.f32 %v60, %v140
    %v145 = vmul.f32 %v65, %v140
    %v146 = vmul.f32 %v70, %v140
    %v147 = vmul.f32 %v75, %v140
    %v148 = vmul.f32 %v80, %v140
    %v149 = vmul.f32 %v85, %v140
    %v150 = vmul.f32 %v90, %v140
    %v151 = vmul.f32 %v95, %v140
    %v152 = vmul.f32 %v100, %v140
    %v153 = vmul.f32 %v105, %v140
    %v154 = vmul.f32 %v110, %v140
    %v155 = vmul.f32 %v115, %v140
    %v156 = vmul.f32 %v120, %v140
    %v157 = vmul.f32 %v125, %v140
    %v158 = vmul.f32 %v130, %v140
    %v159 = vmul.f32 %v135, %v140
    %160 = vset.pattern.permute.xlu0 1
    %161 = vperm.xlu0 %160, %v23
    %v162 = vpop.permute.xlu0 %161
    %164 = vset.pattern.permute.xlu0 1
    %165 = vperm.xlu0 %164, %v24
    %v166 = vpop.permute.xlu0 %165
    %168 = vset.pattern.permute.xlu0 1
    %169 = vperm.xlu0 %168, %v25
    %v170 = vpop.permute.xlu0 %169
    %172 = vset.pattern.permute.xlu0 1
    %173 = vperm.xlu0 %172, %v26
    %v174 = vpop.permute.xlu0 %173
    %176 = vset.pattern.permute.xlu0 1
    %177 = vperm.xlu0 %176, %v27
    %v178 = vpop.permute.xlu0 %177
    %180 = vset.pattern.permute.xlu0 1
    %181 = vperm.xlu0 %180, %v28
    %v182 = vpop.permute.xlu0 %181
    %184 = vset.pattern.permute.xlu0 1
    %185 = vperm.xlu0 %184, %v29
    %v186 = vpop.permute.xlu0 %185
    %188 = vset.pattern.permute.xlu0 1
    %189 = vperm.xlu0 %188, %v30
    %v190 = vpop.permute.xlu0 %189
    %192 = vset.pattern.permute.xlu0 1
    %193 = vperm.xlu0 %192, %v31
    %v194 = vpop.permute.xlu0 %193
    %196 = vset.pattern.permute.xlu0 1
    %197 = vperm.xlu0 %196, %v32
    %v198 = vpop.permute.xlu0 %197
    %200 = vset.pattern.permute.xlu0 1
    %201 = vperm.xlu0 %200, %v33
    %v202 = vpop.permute.xlu0 %201
    %204 = vset.pattern.permute.xlu0 1
    %205 = vperm.xlu0 %204, %v34
    %v206 = vpop.permute.xlu0 %205
    %208 = vset.pattern.permute.xlu0 1
    %209 = vperm.xlu0 %208, %v35
    %v210 = vpop.permute.xlu0 %209
    %212 = vset.pattern.permute.xlu0 1
    %213 = vperm.xlu0 %212, %v36
    %v214 = vpop.permute.xlu0 %213
    %216 = vset.pattern.permute.xlu0 1
    %217 = vperm.xlu0 %216, %v37
    %v218 = vpop.permute.xlu0 %217
    %220 = vset.pattern.permute.xlu0 1
    %221 = vperm.xlu0 %220, %v38
    %v222 = vpop.permute.xlu0 %221
    %224 = vset.pattern.permute.xlu0 1
    %225 = vperm.xlu0 %224, %v39
    %v226 = vpop.permute.xlu0 %225
    %228 = vset.pattern.permute.xlu0 1
    %229 = vperm.xlu0 %228, %v40
    %v230 = vpop.permute.xlu0 %229
    %232 = vset.pattern.permute.xlu0 1
    %233 = vperm.xlu0 %232, %v41
    %v234 = vpop.permute.xlu0 %233
    %v236 = vlaneseq
    %v237 = vshrl.u32 %v236, 7
    %v238 = vsub.s32 0, %v237
    %v239 = vrot.slane %v22, %v238
    %v240 = vmul.f32 %v162, %v239
    %v241 = vmul.f32 %v166, %v239
    %v242 = vmul.f32 %v170, %v239
    %v243 = vmul.f32 %v174, %v239
    %v244 = vmul.f32 %v178, %v239
    %v245 = vmul.f32 %v182, %v239
    %v246 = vmul.f32 %v186, %v239
    %v247 = vmul.f32 %v190, %v239
    %v248 = vmul.f32 %v194, %v239
    %v249 = vmul.f32 %v198, %v239
    %v250 = vmul.f32 %v202, %v239
    %v251 = vmul.f32 %v206, %v239
    %v252 = vmul.f32 %v210, %v239
    %v253 = vmul.f32 %v214, %v239
    %v254 = vmul.f32 %v218, %v239
    %v255 = vmul.f32 %v222, %v239
    %v256 = vmul.f32 %v226, %v239
    %v257 = vmul.f32 %v230, %v239
    %v258 = vmul.f32 %v234, %v239
    %v259 = vadd.f32 %v141, %v240
    %v260 = vadd.f32 %v142, %v241
    %v261 = vadd.f32 %v143, %v242
    %v262 = vadd.f32 %v144, %v243
    %v263 = vadd.f32 %v145, %v244
    %v264 = vadd.f32 %v146, %v245
    %v265 = vadd.f32 %v147, %v246
    %v266 = vadd.f32 %v148, %v247
    %v267 = vadd.f32 %v149, %v248
    %v268 = vadd.f32 %v150, %v249
    %v269 = vadd.f32 %v151, %v250
    %v270 = vadd.f32 %v152, %v251
    %v271 = vadd.f32 %v153, %v252
    %v272 = vadd.f32 %v154, %v253
    %v273 = vadd.f32 %v155, %v254
    %v274 = vadd.f32 %v156, %v255
    %v275 = vadd.f32 %v157, %v256
    %v276 = vadd.f32 %v158, %v257
    %v277 = vadd.f32 %v159, %v258
    %v278 = vld [vmem:[%s2] sm:$0xff]
    %v279 = vld [vmem:[%s2 + $0x8] sm:$0xff]
    %v280 = vld [vmem:[%s2 + $0x10] sm:$0xff]
    %v281 = vld [vmem:[%s2 + $0x18] sm:$0xff]
    %v282 = vld [vmem:[%s2 + $0x20] sm:$0xff]
    %v283 = vld [vmem:[%s2 + $0x28] sm:$0xff]
    %v284 = vld [vmem:[%s2 + $0x30] sm:$0xff]
    %v285 = vld [vmem:[%s2 + $0x38] sm:$0xff]
    %v286 = vld [vmem:[%s2 + $0x40] sm:$0xff]
    %v287 = vld [vmem:[%s2 + $0x48] sm:$0xff]
    %v288 = vld [vmem:[%s2 + $0x50] sm:$0xff]
    %v289 = vld [vmem:[%s2 + $0x58] sm:$0xff]
    %v290 = vld [vmem:[%s2 + $0x60] sm:$0xff]
    %v291 = vld [vmem:[%s2 + $0x68] sm:$0xff]
    %v292 = vld [vmem:[%s2 + $0x70] sm:$0xff]
    %v293 = vld [vmem:[%s2 + $0x78] sm:$0xff]
    %v294 = vld [vmem:[%s2 + $0x80] sm:$0xff]
    %v295 = vld [vmem:[%s2 + $0x88] sm:$0xff]
    %v296 = vld [vmem:[%s2 + $0x90] sm:$0x3f]
    %298 = vset.pattern.permute.xlu0 0
    %299 = vperm.xlu0 %298, %v278
    %v300 = vpop.permute.xlu0 %299
    %303 = vset.pattern.permute.xlu0 0
    %304 = vperm.xlu0 %303, %v279
    %v305 = vpop.permute.xlu0 %304
    %308 = vset.pattern.permute.xlu0 0
    %309 = vperm.xlu0 %308, %v280
    %v310 = vpop.permute.xlu0 %309
    %313 = vset.pattern.permute.xlu0 0
    %314 = vperm.xlu0 %313, %v281
    %v315 = vpop.permute.xlu0 %314
    %318 = vset.pattern.permute.xlu0 0
    %319 = vperm.xlu0 %318, %v282
    %v320 = vpop.permute.xlu0 %319
    %323 = vset.pattern.permute.xlu0 0
    %324 = vperm.xlu0 %323, %v283
    %v325 = vpop.permute.xlu0 %324
    %328 = vset.pattern.permute.xlu0 0
    %329 = vperm.xlu0 %328, %v284
    %v330 = vpop.permute.xlu0 %329
    %333 = vset.pattern.permute.xlu0 0
    %334 = vperm.xlu0 %333, %v285
    %v335 = vpop.permute.xlu0 %334
    %338 = vset.pattern.permute.xlu0 0
    %339 = vperm.xlu0 %338, %v286
    %v340 = vpop.permute.xlu0 %339
    %343 = vset.pattern.permute.xlu0 0
    %344 = vperm.xlu0 %343, %v287
    %v345 = vpop.permute.xlu0 %344
    %348 = vset.pattern.permute.xlu0 0
    %349 = vperm.xlu0 %348, %v288
    %v350 = vpop.permute.xlu0 %349
    %353 = vset.pattern.permute.xlu0 0
    %354 = vperm.xlu0 %353, %v289
    %v355 = vpop.permute.xlu0 %354
    %358 = vset.pattern.permute.xlu0 0
    %359 = vperm.xlu0 %358, %v290
    %v360 = vpop.permute.xlu0 %359
    %363 = vset.pattern.permute.xlu0 0
    %364 = vperm.xlu0 %363, %v291
    %v365 = vpop.permute.xlu0 %364
    %368 = vset.pattern.permute.xlu0 0
    %369 = vperm.xlu0 %368, %v292
    %v370 = vpop.permute.xlu0 %369
    %373 = vset.pattern.permute.xlu0 0
    %374 = vperm.xlu0 %373, %v293
    %v375 = vpop.permute.xlu0 %374
    %378 = vset.pattern.permute.xlu0 0
    %379 = vperm.xlu0 %378, %v294
    %v380 = vpop.permute.xlu0 %379
    %383 = vset.pattern.permute.xlu0 0
    %384 = vperm.xlu0 %383, %v295
    %v385 = vpop.permute.xlu0 %384
    %388 = vset.pattern.permute.xlu0 0
    %389 = vperm.xlu0 %388, %v296
    %v390 = vpop.permute.xlu0 %389
    %v392 = vadd.f32 %v259, %v300
    %v393 = vadd.f32 %v260, %v305
    %v394 = vadd.f32 %v261, %v310
    %v395 = vadd.f32 %v262, %v315
    %v396 = vadd.f32 %v263, %v320
    %v397 = vadd.f32 %v264, %v325
    %v398 = vadd.f32 %v265, %v330
    %v399 = vadd.f32 %v266, %v335
    %v400 = vadd.f32 %v267, %v340
    %v401 = vadd.f32 %v268, %v345
    %v402 = vadd.f32 %v269, %v350
    %v403 = vadd.f32 %v270, %v355
    %v404 = vadd.f32 %v271, %v360
    %v405 = vadd.f32 %v272, %v365
    %v406 = vadd.f32 %v273, %v370
    %v407 = vadd.f32 %v274, %v375
    %v408 = vadd.f32 %v275, %v380
    %v409 = vadd.f32 %v276, %v385
    %v410 = vadd.f32 %v277, %v390
    %v411 = vmax.f32 %v392, 0.0
    %v412 = vmax.f32 %v393, 0.0
    %v413 = vmax.f32 %v394, 0.0
    %v414 = vmax.f32 %v395, 0.0
    %v415 = vmax.f32 %v396, 0.0
    %v416 = vmax.f32 %v397, 0.0
    %v417 = vmax.f32 %v398, 0.0
    %v418 = vmax.f32 %v399, 0.0
    %v419 = vmax.f32 %v400, 0.0
    %v420 = vmax.f32 %v401, 0.0
    %v421 = vmax.f32 %v402, 0.0
    %v422 = vmax.f32 %v403, 0.0
    %v423 = vmax.f32 %v404, 0.0
    %v424 = vmax.f32 %v405, 0.0
    %v425 = vmax.f32 %v406, 0.0
    %v426 = vmax.f32 %v407, 0.0
    %v427 = vmax.f32 %v408, 0.0
    %v428 = vmax.f32 %v409, 0.0
    %v429 = vmax.f32 %v410, 0.0
    %v430 = vld [vmem:[%s3] sm:$0xf]
    %v431 = vld [vmem:[%s4] sm:$0x3]
    %433 = vset.pattern.permute.xlu0 0
    %434 = vperm.xlu0 %433, %v431
    %v435 = vpop.permute.xlu0 %434
    %v439 = vunpack.c.l.s4 1983009808
    %v440 = vunpack.c.0.s8 %v439
    %v441 = vlaneseq
    %v442 = vshrl.u32 %v441, 7
    %v443 = vsub.s32 %v440, %v442
    %v444 = vrot.slane %v430, %v443
    %v445 = vcombine.high %v444, %v444
    %vm447 = vcmask 179200
    %v448 = vsel %vm447, %v445, 0
    %vm450 = vcmask 1045504
    %v452 = vsel %vm450, %v429, 0
    %454 = vmatprep.subr.mxu0 0.0
    %455 = vmatpush1.msra.mxu0 %v426
    %456 = vmatprep.subr.mxu0 0.0
    %457 = vmatpush1.msra.mxu0 %v425
    %458 = vmatprep.subr.mxu0 0.0
    %459 = vmatpush1.msra.mxu0 %v424
    %460 = vmatprep.subr.mxu0 0.0
    %461 = vmatpush1.msra.mxu0 %v423
    %462 = vmatprep.subr.mxu0 0.0
    %463 = vmatpush1.msra.mxu0 %v422
    %464 = vmatprep.subr.mxu0 0.0
    %465 = vmatpush1.msra.mxu0 %v421
    %466 = vmatprep.subr.mxu0 0.0
    %467 = vmatpush1.msra.mxu0 %v420
    %468 = vmatprep.subr.mxu0 0.0
    %469 = vmatpush1.msra.mxu0 %v419
    %470 = vmatprep.subr.mxu0 0.0
    %471 = vmatpush1.msra.mxu0 %v418
    %472 = vmatprep.subr.mxu0 0.0
    %473 = vmatpush1.msra.mxu0 %v417
    %474 = vmatprep.subr.mxu0 0.0
    %475 = vmatpush1.msra.mxu0 %v416
    %476 = vmatprep.subr.mxu0 0.0
    %477 = vmatpush1.msra.mxu0 %v415
    %478 = vmatprep.subr.mxu0 0.0
    %479 = vmatpush1.msra.mxu0 %v414
    %480 = vmatprep.subr.mxu0 0.0
    %481 = vmatpush1.msra.mxu0 %v413
    %482 = vmatprep.subr.mxu0 0.0
    %483 = vmatpush1.msra.mxu0 %v412
    %484 = vmatprep.subr.mxu0 0.0
    %485 = vmatpush1.msra.mxu0 %v411
    %486 = vmatprep.subr.mxu0 0.0
    %487 = vmatpush2.msra.mxu0 0.0
    %488 = vmatprep.subr.mxu0 0.0
    %489 = vmatpush2.msra.mxu0 0.0
    %490 = vmatprep.subr.mxu0 0.0
    %491 = vmatpush2.msra.mxu0 0.0
    %492 = vmatprep.subr.mxu0 0.0
    %493 = vmatpush2.msra.mxu0 0.0
    %494 = vmatprep.subr.mxu0 0.0
    %495 = vmatpush2.msra.mxu0 0.0
    %496 = vmatprep.subr.mxu0 0.0
    %497 = vmatpush2.msra.mxu0 0.0
    %498 = vmatprep.subr.mxu0 0.0
    %499 = vmatpush2.msra.mxu0 0.0
    %500 = vmatprep.subr.mxu0 0.0
    %501 = vmatpush2.msra.mxu0 0.0
    %502 = vmatprep.subr.mxu0 0.0
    %503 = vmatpush2.msra.mxu0 0.0
    %504 = vmatprep.subr.mxu0 0.0
    %505 = vmatpush2.msra.mxu0 0.0
    %506 = vmatprep.subr.mxu0 0.0
    %507 = vmatpush2.msra.mxu0 0.0
    %508 = vmatprep.subr.mxu0 0.0
    %509 = vmatpush2.msra.mxu0 0.0
    %510 = vmatprep.subr.mxu0 0.0
    %511 = vmatpush2.msra.mxu0 0.0
    %512 = vmatprep.subr.mxu0 0.0
    %513 = vmatpush2.msra.mxu0 %v452
    %514 = vmatprep.subr.mxu0 0.0
    %515 = vmatpush2.msra.mxu0 %v428
    %516 = vmatprep.subr.mxu0 0.0
    %517 = vmatpush2.msra.mxu0 %v427
    %518 = vmatprep.mubr.f32.mxu0 %v448
    %519 = vmatmul.mubr.f32.gmra.mxu0 %v444
    %v520 = vpop.f32.mrf.mxu0
    %v521 = vadd.f32 %v435, %v520
    %v522 = vpop.f32.mrf.mxu0
    %523 = vdwg.mxu0
    %v524 = vmax.f32 %v521, 0.0
    %525 = vst [vmem:[#allocation2] sm:$0x3] %v524
    // Predicated region
    $region22: #{tpu_custom_call.1} parent=1 // pred_check
      _
    $region23: #{tpu_custom_call.1} parent=1 // pred_check_branch
      %527 = sbr.rel (0) target = $region25
    $region24: #{tpu_custom_call.1} parent=1 // pred_region
      %s529 = ssub.s32 32, 32
      %530 = vsyncadd [#allocation3], %s529
      %s532 = sshll.u32 [#allocation2], 4
      %s533 = int_to_ptr.vmem [resolvable:$true] %s532
      %535 = dma.vmem_to_hbm [thread:$0]  %s533, 32, %s5, [#allocation3]
    $region25: #{tpu_custom_call.1} parent=1 // pred_fallthru
      _
    // Predicated region
    $region26: #{tpu_custom_call.1} parent=1 // pred_check
      _
    $region27: #{tpu_custom_call.1} parent=1 // pred_check_branch
      %537 = sbr.rel (0) target = $region29
    $region28: #{tpu_custom_call.1} parent=1 // pred_region
      %538 = dma.done [#allocation3], 32
    $region29: #{tpu_custom_call.1} parent=1 // pred_fallthru
      _
    %539 = vsyncpa [#allocation3], 1

</llo_original>
